<compile_context>
chip_gen: v7x
topology: tpu7x:2x2x1
jax: 0.10.0
libtpu: 0.0.40
codegen_flags: <defaults>
</compile_context>

<pallas_src>
import functools

import jax
import jax.numpy as jnp
from jax.experimental import pallas as pl
from jax.experimental.pallas import tpu as pltpu


# --------------------------------------------------------------------------
# Kernels
# --------------------------------------------------------------------------

def _fused_kernel(x_ref, w1_ref, b1_ref, w2_ref, b2_ref, o_ref, *, inv_hw):
    """Single pass per batch: pool + channel MLP + sigmoid + re-weight."""
    x = x_ref[0]                                                     # (C, HWp) native dtype
    # Exact f32 spatial sum (zero padding does not perturb it; inv_hw = 1/true_HW).
    s = jnp.sum(x.astype(jnp.float32), axis=-1, keepdims=True)       # (C, 1)
    avg = s * inv_hw
    h = jnp.dot(w1_ref[...], avg, preferred_element_type=jnp.float32) + b1_ref[...]
    h = jnp.maximum(h, 0.0)                                          # (C/r, 1)
    logits = jnp.dot(w2_ref[...], h, preferred_element_type=jnp.float32) + b2_ref[...]
    y = jax.nn.sigmoid(logits).astype(o_ref.dtype)                   # (C, 1)
    o_ref[0] = x * y


def _pool_mlp_kernel(x_ref, w1_ref, b1_ref, w2_ref, b2_ref, y_ref, acc_ref, *, inv_hw):
    """Pass 1 (fallback): spatially-tiled global average pool + channel MLP."""
    t = pl.program_id(1)

    @pl.when(t == 0)
    def _():
        acc_ref[...] = jnp.zeros_like(acc_ref)

    # f32 accumulation of the spatial sum for this (batch, spatial-tile) step.
    # TODO(synk): if profiling shows this VPU-bound for bf16 on v5e, switch to an
    # MXU reduction: jnp.dot(x_ref[0], ones((T,1), x.dtype), preferred_element_type=f32).
    acc_ref[...] += jnp.sum(x_ref[0].astype(jnp.float32), axis=-1, keepdims=True)

    @pl.when(t == pl.num_programs(1) - 1)
    def _():
        avg = acc_ref[...] * inv_hw                                  # (C, 1)
        h = jnp.dot(w1_ref[...], avg, preferred_element_type=jnp.float32) + b1_ref[...]
        h = jnp.maximum(h, 0.0)                                      # (C/r, 1)
        logits = jnp.dot(w2_ref[...], h, preferred_element_type=jnp.float32) + b2_ref[...]
        # Gate already in the activation dtype: pass 2 needs no per-step cast.
        y_ref[0] = jax.nn.sigmoid(logits).astype(y_ref.dtype)        # (C, 1)


def _scale_kernel(y_ref, x_ref, o_ref):
    """Pass 2 (fallback): out = x * y, broadcast over the spatial (lane) axis."""
    o_ref[0] = x_ref[0] * y_ref[0]


# --------------------------------------------------------------------------
# Tiling / budget helpers
# --------------------------------------------------------------------------

_MiB = 1024 * 1024


def _vmem_budgets():
    """Generation-aware (vmem_limit, pass2_block_target, pass1_block_target, fused_slab_limit)."""
    try:
        info = pltpu.get_tpu_info()
        cap = getattr(info, "vmem_capacity_bytes", None) or 64 * _MiB
    except Exception:  # pragma: no cover - conservative default (v7x-like)
        cap = 64 * _MiB
    if cap >= 128 * _MiB:            # v5e / v6e: 128 MiB physical VMEM
        vmem_limit = 48 * _MiB
        pass2_target = 6 * _MiB      # 4x double-buffered in+out = 24 MiB
    else:                            # v7x: 64 MiB per TensorCore
        vmem_limit = 32 * _MiB
        pass2_target = 4 * _MiB      # 4x = 16 MiB
    pass1_target = 2 * pass2_target  # pass 1 only double-buffers the input block
    fused_limit = vmem_limit // 4 - _MiB   # in+out, double-buffered, + headroom
    return vmem_limit, pass2_target, pass1_target, fused_limit


def _pick_spatial_tile(hw_pad, c, itemsize, target_bytes):
    """Largest multiple-of-128 divisor of hw_pad with a (C, T) block <= target_bytes."""
    best = 128
    t = 128
    while t <= hw_pad:
        if hw_pad % t == 0 and c * t * itemsize <= target_bytes:
            best = t
        t += 128
    return min(best, hw_pad)


# --------------------------------------------------------------------------
# Public wrapper
# --------------------------------------------------------------------------

def ca_layer(x, w1, b1, w2, b2, *, spatial_tile=None, force_two_pass=False):
    """x: (N, C, H, W); w1: (C//r, C); b1: (C//r, 1); w2: (C, C//r); b2: (C, 1)."""
    N, C, H, W = x.shape
    HW = H * W
    mid = w1.shape[0]
    itemsize = jnp.dtype(x.dtype).itemsize

    vmem_limit, p2_target, p1_target, fused_limit = _vmem_budgets()

    def cparams(sem):
        return pltpu.CompilerParams(dimension_semantics=sem,
                                    vmem_limit_bytes=vmem_limit)

    # Zero-pad the flattened spatial axis to a multiple of 128 so all big blocks
    # stay lane-dense (unmasked vst). inv_hw uses the TRUE H*W, so the mean is exact.
    HWp = -(-HW // 128) * 128
    x_flat = x.reshape(N, C, HW)
    if HWp != HW:
        x_flat = jnp.pad(x_flat, ((0, 0), (0, 0), (0, HWp - HW)))
    inv_hw = 1.0 / HW

    slab_bytes = C * HWp * itemsize
    use_fused = (not force_two_pass) and spatial_tile is None and slab_bytes <= fused_limit

    weight_specs = [
        pl.BlockSpec((mid, C), lambda *a: (0, 0)),
        pl.BlockSpec((mid, 1), lambda *a: (0, 0)),
        pl.BlockSpec((C, mid), lambda *a: (0, 0)),
        pl.BlockSpec((C, 1), lambda *a: (0, 0)),
    ]

    if use_fused:
        # ---- Fused single pass: x read once, written once.
        out = pl.pallas_call(
            functools.partial(_fused_kernel, inv_hw=inv_hw),
            out_shape=jax.ShapeDtypeStruct((N, C, HWp), x.dtype),
            grid_spec=pltpu.PrefetchScalarGridSpec(
                num_scalar_prefetch=0,
                grid=(N,),
                in_specs=[pl.BlockSpec((1, C, HWp), lambda n: (n, 0, 0))] + weight_specs,
                out_specs=pl.BlockSpec((1, C, HWp), lambda n: (n, 0, 0)),
            ),
            compiler_params=cparams(("parallel",)),
        )(x_flat, w1, b1, w2, b2)
        # TODO(synk): with N == 1 the second v7x TensorCore idles here; could add an
        # outer parallel split of the spatial axis with a partial-sum epilogue.
    else:
        # ---- Two-pass fallback with decoupled tile sizes.
        if spatial_tile is not None:
            T1 = T2 = int(spatial_tile)
            assert HWp % T2 == 0, f"spatial_tile {T2} must divide padded H*W={HWp}"
            assert T2 % 128 == 0 or T2 == HWp, "spatial_tile should be a multiple of 128"
            assert 4 * C * T2 * itemsize <= vmem_limit, (
                f"spatial_tile {T2} needs ~{4 * C * T2 * itemsize} B of VMEM "
                f"(> limit {vmem_limit})")
        else:
            T1 = _pick_spatial_tile(HWp, C, itemsize, p1_target)  # pass 1: input only
            T2 = _pick_spatial_tile(HWp, C, itemsize, p2_target)  # pass 2: in + out

        # Pass 1: global average pool + channel MLP -> gate y of shape (N, C, 1).
        y = pl.pallas_call(
            functools.partial(_pool_mlp_kernel, inv_hw=inv_hw),
            out_shape=jax.ShapeDtypeStruct((N, C, 1), x.dtype),
            grid_spec=pltpu.PrefetchScalarGridSpec(
                num_scalar_prefetch=0,
                grid=(N, HWp // T1),
                in_specs=[pl.BlockSpec((1, C, T1), lambda n, t: (n, 0, t))] + weight_specs,
                out_specs=pl.BlockSpec((1, C, 1), lambda n, t: (n, 0, 0)),
                scratch_shapes=[pltpu.VMEM((C, 1), jnp.float32)],
            ),
            compiler_params=cparams(("parallel", "arbitrary")),
        )(x_flat, w1, b1, w2, b2)

        # Pass 2: broadcast re-weight, fully parallel lane-dense tiles.
        out = pl.pallas_call(
            _scale_kernel,
            out_shape=jax.ShapeDtypeStruct((N, C, HWp), x.dtype),
            grid_spec=pltpu.PrefetchScalarGridSpec(
                num_scalar_prefetch=0,
                grid=(N, HWp // T2),
                in_specs=[
                    pl.BlockSpec((1, C, 1), lambda n, t: (n, 0, 0)),
                    pl.BlockSpec((1, C, T2), lambda n, t: (n, 0, t)),
                ],
                out_specs=pl.BlockSpec((1, C, T2), lambda n, t: (n, 0, t)),
            ),
            compiler_params=cparams(("parallel", "parallel")),
        )(y, x_flat)

    if HWp != HW:
        out = out[:, :, :HW]
    return out.reshape(N, C, H, W)


# --------------------------------------------------------------------------
# Reference + self-test
# --------------------------------------------------------------------------

def _reference(x, w1, b1, w2, b2):
    xf = x.astype(jnp.float32)
    avg = jnp.mean(xf, axis=(2, 3), keepdims=True)                  # (N, C, 1, 1)
    h = jnp.einsum("mc,nchw->nmhw", w1, avg) + b1[None, :, :, None]
    h = jnp.maximum(h, 0.0)
    y = jnp.einsum("cm,nmhw->nchw", w2, h) + b2[None, :, :, None]
    y = jax.nn.sigmoid(y)
    return (xf * y).astype(x.dtype)


if __name__ == "__main__":
    # Small shapes consistent with the module (default reduction=16).
    N, C, H, W = 2, 64, 32, 32
    reduction = 16
    mid = C // reduction

    key = jax.random.PRNGKey(0)
    kx, k1, kb1, k2, kb2 = jax.random.split(key, 5)

    x = jax.random.normal(kx, (N, C, H, W), dtype=jnp.float32)

    # Synthetic Conv2d 1x1 parameters (weights squeezed to 2D).
    bound1 = 1.0 / (C ** 0.5)
    w1 = jax.random.uniform(k1, (mid, C), minval=-bound1, maxval=bound1, dtype=jnp.float32)
    b1 = jax.random.uniform(kb1, (mid, 1), minval=-bound1, maxval=bound1, dtype=jnp.float32)
    bound2 = 1.0 / (mid ** 0.5)
    w2 = jax.random.uniform(k2, (C, mid), minval=-bound2, maxval=bound2, dtype=jnp.float32)
    b2 = jax.random.uniform(kb2, (C, 1), minval=-bound2, maxval=bound2, dtype=jnp.float32)

    ref = _reference(x, w1, b1, w2, b2)

    # 1) Fused single-pass path (per-batch slab fits the VMEM budget).
    out = ca_layer(x, w1, b1, w2, b2)
    jax.block_until_ready(out)
    assert out.shape == (N, C, H, W)
    assert jnp.allclose(out, ref, atol=1e-5, rtol=1e-5), "mismatch vs reference (fused)"

    # 2) Two-pass fallback with an explicit small tile (multi-step spatial accumulation).
    out_tp = ca_layer(x, w1, b1, w2, b2, spatial_tile=256, force_two_pass=True)
    jax.block_until_ready(out_tp)
    assert jnp.allclose(out_tp, ref, atol=1e-5, rtol=1e-5), "mismatch vs reference (two-pass)"

    # 3) Ragged spatial extent (H*W not a multiple of 128): zero-pad + exact mean + slice.
    Hr, Wr = 10, 10
    xr = jax.random.normal(kx, (N, C, Hr, Wr), dtype=jnp.float32)
    ref_r = _reference(xr, w1, b1, w2, b2)
    out_r = ca_layer(xr, w1, b1, w2, b2)
    jax.block_until_ready(out_r)
    assert out_r.shape == (N, C, Hr, Wr)
    assert jnp.allclose(out_r, ref_r, atol=1e-5, rtol=1e-5), "mismatch vs reference (ragged)"

    print("KERNEL_OK")
</pallas_src>

<mosaic_0001>
module attributes {stable_mosaic.version = 11 : i64} {
  func.func @_fused_kernel(%arg0: i32, %arg1: memref<1x64x1024xf32, #tpu.memory_space<vmem>>, %arg2: memref<4x64xf32, #tpu.memory_space<vmem>>, %arg3: memref<4x1xf32, #tpu.memory_space<vmem>>, %arg4: memref<64x4xf32, #tpu.memory_space<vmem>>, %arg5: memref<64x1xf32, #tpu.memory_space<vmem>>, %arg6: memref<1x64x1024xf32, #tpu.memory_space<vmem>>) attributes {dimension_semantics = [#tpu.dimension_semantics<parallel>], iteration_bounds = array<i64: 2>, scalar_prefetch = 0 : i64, scratch_operands = 0 : i64, tpu.core_type = #tpu.core_type<tc>, window_params = [{transform_indices = @transform_0, window_bounds = array<i64: 1, 64, 1024>}, {pipeline_mode = #tpu.pipeline_mode<synchronous>, transform_indices = @transform_1, window_bounds = array<i64: 4, 64>}, {pipeline_mode = #tpu.pipeline_mode<synchronous>, transform_indices = @transform_2, window_bounds = array<i64: 4, 1>}, {pipeline_mode = #tpu.pipeline_mode<synchronous>, transform_indices = @transform_3, window_bounds = array<i64: 64, 4>}, {pipeline_mode = #tpu.pipeline_mode<synchronous>, transform_indices = @transform_4, window_bounds = array<i64: 64, 1>}, {transform_indices = @transform_5, window_bounds = array<i64: 1, 64, 1024>}]} {
    %c0 = arith.constant 0 : index
    %c0_0 = arith.constant 0 : index
    %c0_1 = arith.constant 0 : index
    %0 = vector.load %arg1[%c0, %c0_0, %c0_1] : memref<1x64x1024xf32, #tpu.memory_space<vmem>>, vector<1x64x1024xf32>
    %1 = vector.shape_cast %0 : vector<1x64x1024xf32> to vector<64x1024xf32>
    %cst = arith.constant dense<0.000000e+00> : vector<64xf32>
    %2 = vector.multi_reduction <add>, %1, %cst [1] : vector<64x1024xf32> to vector<64xf32>
    %3 = vector.shape_cast %2 : vector<64xf32> to vector<64x1xf32>
    %cst_2 = arith.constant 9.765625E-4 : f32
    %4 = vector.broadcast %cst_2 : f32 to vector<64x1xf32>
    %5 = arith.mulf %3, %4 : vector<64x1xf32>
    %c0_3 = arith.constant 0 : index
    %c0_4 = arith.constant 0 : index
    %6 = vector.load %arg2[%c0_3, %c0_4] : memref<4x64xf32, #tpu.memory_space<vmem>>, vector<4x64xf32>
    %cst_5 = arith.constant dense<0.000000e+00> : vector<4x1xf32>
    %7 = tpu.matmul %6, %5, %cst_5 {dimension_numbers = #tpu.dot_dimension_numbers<[1], [0], [0], [1], [0, 0, 1, 1], [], []>} : vector<4x64xf32>, vector<64x1xf32>, vector<4x1xf32> -> vector<4x1xf32>
    %c0_6 = arith.constant 0 : index
    %c0_7 = arith.constant 0 : index
    %8 = vector.load %arg3[%c0_6, %c0_7] : memref<4x1xf32, #tpu.memory_space<vmem>>, vector<4x1xf32>
    %9 = arith.addf %7, %8 : vector<4x1xf32>
    %cst_8 = arith.constant 0.000000e+00 : f32
    %10 = vector.broadcast %cst_8 : f32 to vector<4x1xf32>
    %11 = arith.maximumf %9, %10 : vector<4x1xf32>
    %c0_9 = arith.constant 0 : index
    %c0_10 = arith.constant 0 : index
    %12 = vector.load %arg4[%c0_9, %c0_10] : memref<64x4xf32, #tpu.memory_space<vmem>>, vector<64x4xf32>
    %cst_11 = arith.constant dense<0.000000e+00> : vector<64x1xf32>
    %13 = tpu.matmul %12, %11, %cst_11 {dimension_numbers = #tpu.dot_dimension_numbers<[1], [0], [0], [1], [0, 0, 1, 1], [], []>} : vector<64x4xf32>, vector<4x1xf32>, vector<64x1xf32> -> vector<64x1xf32>
    %c0_12 = arith.constant 0 : index
    %c0_13 = arith.constant 0 : index
    %14 = vector.load %arg5[%c0_12, %c0_13] : memref<64x1xf32, #tpu.memory_space<vmem>>, vector<64x1xf32>
    %15 = arith.addf %13, %14 : vector<64x1xf32>
    %16 = arith.negf %15 : vector<64x1xf32>
    %17 = math.exp %16 : vector<64x1xf32>
    %cst_14 = arith.constant 1.000000e+00 : f32
    %18 = vector.broadcast %cst_14 : f32 to vector<64x1xf32>
    %19 = arith.addf %18, %17 : vector<64x1xf32>
    %20 = arith.divf %18, %19 : vector<64x1xf32>
    %21 = vector.broadcast %20 : vector<64x1xf32> to vector<64x1024xf32>
    %22 = arith.mulf %1, %21 : vector<64x1024xf32>
    %c0_15 = arith.constant 0 : index
    %c0_16 = arith.constant 0 : index
    %c0_17 = arith.constant 0 : index
    %23 = vector.load %arg6[%c0_15, %c0_16, %c0_17] : memref<1x64x1024xf32, #tpu.memory_space<vmem>>, vector<1x64x1024xf32>
    %24 = vector.shape_cast %23 : vector<1x64x1024xf32> to vector<64x1024xf32>
    %25 = vector.shape_cast %22 : vector<64x1024xf32> to vector<1x64x1024xf32>
    tpu.vector_store %arg6[%c0_15, %c0_16, %c0_17], %25 {strides = array<i32>} : memref<1x64x1024xf32, #tpu.memory_space<vmem>>, vector<1x64x1024xf32>,
    return
  }
  func.func @transform_0(%arg0: i32) -> (i32, i32, i32) {
    %c0_i32 = arith.constant 0 : i32
    %c0_i32_0 = arith.constant 0 : i32
    %c0_i32_1 = arith.constant 0 : i32
    return %arg0, %c0_i32, %c0_i32_0 : i32, i32, i32
  }
  func.func @transform_1(%arg0: i32) -> (i32, i32) {
    %c0_i32 = arith.constant 0 : i32
    %c0_i32_0 = arith.constant 0 : i32
    %c0_i32_1 = arith.constant 0 : i32
    return %c0_i32, %c0_i32_0 : i32, i32
  }
  func.func @transform_2(%arg0: i32) -> (i32, i32) {
    %c0_i32 = arith.constant 0 : i32
    %c0_i32_0 = arith.constant 0 : i32
    %c0_i32_1 = arith.constant 0 : i32
    return %c0_i32, %c0_i32_0 : i32, i32
  }
  func.func @transform_3(%arg0: i32) -> (i32, i32) {
    %c0_i32 = arith.constant 0 : i32
    %c0_i32_0 = arith.constant 0 : i32
    %c0_i32_1 = arith.constant 0 : i32
    return %c0_i32, %c0_i32_0 : i32, i32
  }
  func.func @transform_4(%arg0: i32) -> (i32, i32) {
    %c0_i32 = arith.constant 0 : i32
    %c0_i32_0 = arith.constant 0 : i32
    %c0_i32_1 = arith.constant 0 : i32
    return %c0_i32, %c0_i32_0 : i32, i32
  }
  func.func @transform_5(%arg0: i32) -> (i32, i32, i32) {
    %c0_i32 = arith.constant 0 : i32
    %c0_i32_0 = arith.constant 0 : i32
    %c0_i32_1 = arith.constant 0 : i32
    return %arg0, %c0_i32, %c0_i32_0 : i32, i32, i32
  }
}

</mosaic_0001>

<llo_original>
// kernel: tpu_custom_call.1
$region0: #{tpu_custom_call.1}
  #allocation0 [shape = 'u32[]', space=smem, size = 0x4, offset = 0x4, fixed_abs, tag = 'smem constant byte address 0x4 - core index']
  #allocation1 [shape = 'u32[144,128]{1,0:T(1,128)}', space=vmem, size = 0x12000, scoped, tag = 'internal scratch']
  %s0 = inlined_call_operand.hbm [shape: f32[2,64,1024], index: 0, kind: input, shape index: {}]
  %s1 = inlined_call_operand.vmem [shape: f32[4,64], index: 1, kind: input, shape index: {}]
  %s2 = inlined_call_operand.vmem [shape: f32[4,1], index: 2, kind: input, shape index: {}]
  %s3 = inlined_call_operand.vmem [shape: f32[64,4], index: 3, kind: input, shape index: {}]
  %s4 = inlined_call_operand.vmem [shape: f32[64,1], index: 4, kind: input, shape index: {}]
  %s5 = inlined_call_operand.hbm [shape: f32[2,64,1024], index: 5, kind: output, shape index: {}]
  %s6 = sld [smem:[#allocation0]]
  $region57: #{tpu_custom_call.1} parent=0
    _
  %s8 = ssub.s32 1, %s6
  %s9 = scalar_select 0, %s8, %s6
  $region1: #{tpu_custom_call.1} parent=0
    #allocation2 [shape = 'u8[524288]{0}', space=vmem, size = 0x80000, scoped, tag = 'input window, operand 0']
    #allocation3 [shape = 's32[2]{0}', space=sflag, size = 0x8, scoped, tag = 'scoped memory for tpu_custom_call.1']
    #allocation4 [shape = 's32[2]{0}', space=sflag, size = 0x8, scoped, tag = 'scoped memory for tpu_custom_call.1']
    #allocation5 [shape = 'u8[524288]{0}', space=vmem, size = 0x80000, scoped, tag = 'output window, operand 0']
    %10 = vsyncpa [#allocation3], 0
    %s11 = scalar_lea.sflag [#allocation3], 1
    %12 = vsyncpa %s11, 0
    %13 = vsyncpa [#allocation4], 0
    %s14 = scalar_lea.sflag [#allocation4], 1
    %15 = vsyncpa %s14, 0
    loop: start=0, step=1, limit=4
    $region2: #{tpu_custom_call.1} parent=1 // loop_pre_header
      _
    $region3: #{tpu_custom_call.1} parent=1 // loop_header
      %s17 = sphi 0, %s21
      %p18 = scmp.ge.s32.totalorder %s17, 4
      %s27 = sphi 0, %s29
      %s30 = sphi 0, %s27
      %s31 = sphi 0, %s30
      %s47 = sphi 0, %s31
      %s51 = sphi 0, %s51
      %s53 = sphi 0, %s51
      %s54 = sphi 0, %s53
      %s68 = sphi 0, %s54
      %s72 = sphi 0, %s72
      %s74 = sphi 0, %s72
      %s75 = sphi 0, %s74
      %s89 = sphi 0, %s75
      %s93 = sphi 0, %s93
      %s95 = sphi 0, %s93
      %s96 = sphi 0, %s95
      %s110 = sphi 0, %s96
      %s114 = sphi 0, %s114
      %s116 = sphi 0, %s114
      %s117 = sphi 0, %s116
      %s131 = sphi 0, %s117
      %s137 = sphi 0, %s139
      %s140 = sphi 0, %s137
      %s141 = sphi 0, %s140
      %s157 = sphi 0, %s141
    $region4: #{tpu_custom_call.1} parent=1 // loop_header_branch
      %20 = sbr.rel (%p18) target = $region8
    $region5: #{tpu_custom_call.1} parent=1 // loop_body
      %s22 = ssub.s32 %s17, 1
      %s23 = ssub.s32 %s17, 2
      %s24 = sadd.s32 %s17, 1
      %s25 = ssub.s32 %s17, %s24
      %p26 = scmp.eq.s32.totalorder %s25, 0
      %s28 = sadd.s32 %s27, 1
      %s29 = scalar_select %p26, %s27, %s28
      %p32 = pneg %p26
      %p33 = scmp.eq.s32.totalorder %s17, 1
      %p34 = por %p32, %p33
      %p35 = scmp.ne.s32.totalorder %s27, %s30
      %p36 = scmp.eq.s32.totalorder %s17, 0
      %p37 = por %p35, %p36
      %p38 = scmp.ne.s32.totalorder %s27, %s30
      %p39 = scmp.eq.s32.totalorder %s22, 1
      %p40 = por %p38, %p39
      %p41 = scmp.ne.s32.totalorder %s30, %s31
      %p42 = scmp.eq.s32.totalorder %s22, 0
      %p43 = por %p41, %p42
      %p44 = scmp.ne.s32.totalorder %s30, %s31
      %p45 = scmp.eq.s32.totalorder %s23, 1
      %p46 = por %p44, %p45
      %p48 = scmp.ne.s32.totalorder %s31, %s47
      %p49 = scmp.eq.s32.totalorder %s23, 0
      %p50 = por %p48, %p49
      %s52 = sadd.s32 %s51, 1
      %p55 = scmp.eq.s32.totalorder %s17, 1
      %p56 = scmp.ne.s32.totalorder %s51, %s53
      %p57 = scmp.eq.s32.totalorder %s17, 0
      %p58 = por %p56, %p57
      %p59 = scmp.ne.s32.totalorder %s51, %s53
      %p60 = scmp.eq.s32.totalorder %s22, 1
      %p61 = por %p59, %p60
      %p62 = scmp.ne.s32.totalorder %s53, %s54
      %p63 = scmp.eq.s32.totalorder %s22, 0
      %p64 = por %p62, %p63
      %p65 = scmp.ne.s32.totalorder %s53, %s54
      %p66 = scmp.eq.s32.totalorder %s23, 1
      %p67 = por %p65, %p66
      %p69 = scmp.ne.s32.totalorder %s54, %s68
      %p70 = scmp.eq.s32.totalorder %s23, 0
      %p71 = por %p69, %p70
      %s73 = sadd.s32 %s72, 1
      %p76 = scmp.eq.s32.totalorder %s17, 1
      %p77 = scmp.ne.s32.totalorder %s72, %s74
      %p78 = scmp.eq.s32.totalorder %s17, 0
      %p79 = por %p77, %p78
      %p80 = scmp.ne.s32.totalorder %s72, %s74
      %p81 = scmp.eq.s32.totalorder %s22, 1
      %p82 = por %p80, %p81
      %p83 = scmp.ne.s32.totalorder %s74, %s75
      %p84 = scmp.eq.s32.totalorder %s22, 0
      %p85 = por %p83, %p84
      %p86 = scmp.ne.s32.totalorder %s74, %s75
      %p87 = scmp.eq.s32.totalorder %s23, 1
      %p88 = por %p86, %p87
      %p90 = scmp.ne.s32.totalorder %s75, %s89
      %p91 = scmp.eq.s32.totalorder %s23, 0
      %p92 = por %p90, %p91
      %s94 = sadd.s32 %s93, 1
      %p97 = scmp.eq.s32.totalorder %s17, 1
      %p98 = scmp.ne.s32.totalorder %s93, %s95
      %p99 = scmp.eq.s32.totalorder %s17, 0
      %p100 = por %p98, %p99
      %p101 = scmp.ne.s32.totalorder %s93, %s95
      %p102 = scmp.eq.s32.totalorder %s22, 1
      %p103 = por %p101, %p102
      %p104 = scmp.ne.s32.totalorder %s95, %s96
      %p105 = scmp.eq.s32.totalorder %s22, 0
      %p106 = por %p104, %p105
      %p107 = scmp.ne.s32.totalorder %s95, %s96
      %p108 = scmp.eq.s32.totalorder %s23, 1
      %p109 = por %p107, %p108
      %p111 = scmp.ne.s32.totalorder %s96, %s110
      %p112 = scmp.eq.s32.totalorder %s23, 0
      %p113 = por %p111, %p112
      %s115 = sadd.s32 %s114, 1
      %p118 = scmp.eq.s32.totalorder %s17, 1
      %p119 = scmp.ne.s32.totalorder %s114, %s116
      %p120 = scmp.eq.s32.totalorder %s17, 0
      %p121 = por %p119, %p120
      %p122 = scmp.ne.s32.totalorder %s114, %s116
      %p123 = scmp.eq.s32.totalorder %s22, 1
      %p124 = por %p122, %p123
      %p125 = scmp.ne.s32.totalorder %s116, %s117
      %p126 = scmp.eq.s32.totalorder %s22, 0
      %p127 = por %p125, %p126
      %p128 = scmp.ne.s32.totalorder %s116, %s117
      %p129 = scmp.eq.s32.totalorder %s23, 1
      %p130 = por %p128, %p129
      %p132 = scmp.ne.s32.totalorder %s117, %s131
      %p133 = scmp.eq.s32.totalorder %s23, 0
      %p134 = por %p132, %p133
      %s135 = ssub.s32 %s17, %s24
      %p136 = scmp.eq.s32.totalorder %s135, 0
      %s138 = sadd.s32 %s137, 1
      %s139 = scalar_select %p136, %s137, %s138
      %p142 = pneg %p136
      %p143 = scmp.eq.s32.totalorder %s17, 1
      %p144 = por %p142, %p143
      %p145 = scmp.ne.s32.totalorder %s137, %s140
      %p146 = scmp.eq.s32.totalorder %s17, 0
      %p147 = por %p145, %p146
      %p148 = scmp.ne.s32.totalorder %s137, %s140
      %p149 = scmp.eq.s32.totalorder %s22, 1
      %p150 = por %p148, %p149
      %p151 = scmp.ne.s32.totalorder %s140, %s141
      %p152 = scmp.eq.s32.totalorder %s22, 0
      %p153 = por %p151, %p152
      %p154 = scmp.ne.s32.totalorder %s140, %s141
      %p155 = scmp.eq.s32.totalorder %s23, 1
      %p156 = por %p154, %p155
      %p158 = scmp.ne.s32.totalorder %s141, %s157
      %p159 = scmp.eq.s32.totalorder %s23, 0
      %p160 = por %p158, %p159
      %p161 = scmp.le.s32.totalorder 1, %s17
      %p162 = scmp.lt.s32.totalorder %s17, 3
      %p163 = pnand %p161, %p162
      %p164 = pneg %p163
      // Predicated region
      $region9: #{tpu_custom_call.1} parent=5 // pred_check
        _
      $region10: #{tpu_custom_call.1} parent=5 // pred_check_branch
        %166 = sbr.rel (%p163) target = $region12
      $region11: #{tpu_custom_call.1} parent=5 // pred_region
        %s167 = ssub.s32 %s17, 1
        // Predicated region
        $region13: #{tpu_custom_call.1} parent=11 // pred_check
          %p168 = pneg %p64
        $region14: #{tpu_custom_call.1} parent=11 // pred_check_branch
          %170 = sbr.rel (%p168) target = $region16
        $region15: #{tpu_custom_call.1} parent=11 // pred_region
          _
        $region16: #{tpu_custom_call.1} parent=11 // pred_fallthru
          _
        // Predicated region
        $region17: #{tpu_custom_call.1} parent=11 // pred_check
          %p171 = pneg %p85
        $region18: #{tpu_custom_call.1} parent=11 // pred_check_branch
          %173 = sbr.rel (%p171) target = $region20
        $region19: #{tpu_custom_call.1} parent=11 // pred_region
          _
        $region20: #{tpu_custom_call.1} parent=11 // pred_fallthru
          _
        // Predicated region
        $region21: #{tpu_custom_call.1} parent=11 // pred_check
          %p174 = pneg %p106
        $region22: #{tpu_custom_call.1} parent=11 // pred_check_branch
          %176 = sbr.rel (%p174) target = $region24
        $region23: #{tpu_custom_call.1} parent=11 // pred_region
          _
        $region24: #{tpu_custom_call.1} parent=11 // pred_fallthru
          _
        // Predicated region
        $region25: #{tpu_custom_call.1} parent=11 // pred_check
          %p177 = pneg %p127
        $region26: #{tpu_custom_call.1} parent=11 // pred_check_branch
          %179 = sbr.rel (%p177) target = $region28
        $region27: #{tpu_custom_call.1} parent=11 // pred_region
          _
        $region28: #{tpu_custom_call.1} parent=11 // pred_fallthru
          _
      $region12: #{tpu_custom_call.1} parent=5 // pred_fallthru
        _
      %p180 = scmp.lt.s32.totalorder %s17, 2
      // Predicated region
      $region29: #{tpu_custom_call.1} parent=5 // pred_check
        %p181 = pneg %p180
      $region30: #{tpu_custom_call.1} parent=5 // pred_check_branch
        %183 = sbr.rel (%p181) target = $region32
      $region31: #{tpu_custom_call.1} parent=5 // pred_region
        // Predicated region
        $region33: #{tpu_custom_call.1} parent=31 // pred_check
          %p184 = pneg %p37
        $region34: #{tpu_custom_call.1} parent=31 // pred_check_branch
          %186 = sbr.rel (%p184) target = $region36
        $region35: #{tpu_custom_call.1} parent=31 // pred_region
          %s187 = sand.u32 %s27, 1
          %s188 = scalar_lea.sflag [#allocation3], %s187
          %s189 = sand.u32 %s27, 1
          %s190 = smul.addr %s189, 512
          %s191 = scalar_lea.vmem [#allocation2], %s190
          %s193 = ssub.s32 8192, 8192
          %194 = vsyncadd %s188, %s193
          %s195 = smul.addr %s17, 64
          %s196 = smul.addr %s195, 128
          %s197 = scalar_lea.hbm %s0, %s196
          %s198 = sshll.u32 %s191, 4
          %s199 = int_to_ptr.vmem [resolvable:$true] %s198
          %204 = dma.hbm_to_vmem [thread:$0]  %s197, 8192, %s199, %s188, 1024, 1024, 64
        $region36: #{tpu_custom_call.1} parent=31 // pred_fallthru
          _
      $region32: #{tpu_custom_call.1} parent=5 // pred_fallthru
        _
      %p205 = scmp.le.s32.totalorder 1, %s17
      %p206 = scmp.lt.s32.totalorder %s17, 3
      %p207 = pnand %p205, %p206
      %p208 = pneg %p207
      // Predicated region
      $region37: #{tpu_custom_call.1} parent=5 // pred_check
        _
      $region38: #{tpu_custom_call.1} parent=5 // pred_check_branch
        %210 = sbr.rel (%p207) target = $region40
      $region39: #{tpu_custom_call.1} parent=5 // pred_region
        %s211 = ssub.s32 %s17, 1
        %s212 = sand.u32 %s30, 1
        %s213 = scalar_lea.sflag [#allocation3], %s212
        %s214 = sand.u32 %s30, 1
        %s215 = smul.addr %s214, 512
        %s216 = scalar_lea.vmem [#allocation2], %s215
        // Predicated region
        $region41: #{tpu_custom_call.1} parent=39 // pred_check
          %p217 = pneg %p43
        $region42: #{tpu_custom_call.1} parent=39 // pred_check_branch
          %219 = sbr.rel (%p217) target = $region44
        $region43: #{tpu_custom_call.1} parent=39 // pred_region
          %220 = dma.done %s213, 8192
        $region44: #{tpu_custom_call.1} parent=39 // pred_fallthru
          _
        %s221 = sand.u32 %s30, 1
        %s222 = scalar_lea.sflag [#allocation3], %s221
        %s223 = sand.u32 %s30, 1
        %s224 = smul.addr %s223, 512
        %s225 = scalar_lea.vmem [#allocation2], %s224
        %p226 = pneg %p43
        %p227 = pneg %p40
        %p228 = pneg %p64
        %p229 = pneg %p61
        %p230 = pneg %p85
        %p231 = pneg %p82
        %p232 = pneg %p106
        %p233 = pneg %p103
        %p234 = pneg %p127
        %p235 = pneg %p124
        %p236 = pneg %p153
        %p237 = pneg %p150
        %s238 = sand.u32 %s140, 1
        %s239 = scalar_lea.sflag [#allocation4], %s238
        %s240 = sand.u32 %s140, 1
        %s241 = smul.addr %s240, 512
        %s242 = scalar_lea.vmem [#allocation5], %s241
        %v243 = vld [vmem:[%s216] sm:$0xff]
        %v244 = vld [vmem:[%s216 + $0x8] sm:$0xff]
        %v245 = vld [vmem:[%s216 + $0x10] sm:$0xff]
        %v246 = vld [vmem:[%s216 + $0x18] sm:$0xff]
        %v247 = vld [vmem:[%s216 + $0x20] sm:$0xff]
        %v248 = vld [vmem:[%s216 + $0x28] sm:$0xff]
        %v249 = vld [vmem:[%s216 + $0x30] sm:$0xff]
        %v250 = vld [vmem:[%s216 + $0x38] sm:$0xff]
        %v251 = vld [vmem:[%s216 + $0x40] sm:$0xff]
        %v252 = vld [vmem:[%s216 + $0x48] sm:$0xff]
        %v253 = vld [vmem:[%s216 + $0x50] sm:$0xff]
        %v254 = vld [vmem:[%s216 + $0x58] sm:$0xff]
        %v255 = vld [vmem:[%s216 + $0x60] sm:$0xff]
        %v256 = vld [vmem:[%s216 + $0x68] sm:$0xff]
        %v257 = vld [vmem:[%s216 + $0x70] sm:$0xff]
        %v258 = vld [vmem:[%s216 + $0x78] sm:$0xff]
        %v259 = vld [vmem:[%s216 + $0x80] sm:$0xff]
        %v260 = vld [vmem:[%s216 + $0x88] sm:$0xff]
        %v261 = vld [vmem:[%s216 + $0x90] sm:$0xff]
        %v262 = vld [vmem:[%s216 + $0x98] sm:$0xff]
        %v263 = vld [vmem:[%s216 + $0xa0] sm:$0xff]
        %v264 = vld [vmem:[%s216 + $0xa8] sm:$0xff]
        %v265 = vld [vmem:[%s216 + $0xb0] sm:$0xff]
        %v266 = vld [vmem:[%s216 + $0xb8] sm:$0xff]
        %v267 = vld [vmem:[%s216 + $0xc0] sm:$0xff]
        %v268 = vld [vmem:[%s216 + $0xc8] sm:$0xff]
        %v269 = vld [vmem:[%s216 + $0xd0] sm:$0xff]
        %v270 = vld [vmem:[%s216 + $0xd8] sm:$0xff]
        %v271 = vld [vmem:[%s216 + $0xe0] sm:$0xff]
        %v272 = vld [vmem:[%s216 + $0xe8] sm:$0xff]
        %v273 = vld [vmem:[%s216 + $0xf0] sm:$0xff]
        %v274 = vld [vmem:[%s216 + $0xf8] sm:$0xff]
        %v275 = vld [vmem:[%s216 + $0x100] sm:$0xff]
        %v276 = vld [vmem:[%s216 + $0x108] sm:$0xff]
        %v277 = vld [vmem:[%s216 + $0x110] sm:$0xff]
        %v278 = vld [vmem:[%s216 + $0x118] sm:$0xff]
        %v279 = vld [vmem:[%s216 + $0x120] sm:$0xff]
        %v280 = vld [vmem:[%s216 + $0x128] sm:$0xff]
        %v281 = vld [vmem:[%s216 + $0x130] sm:$0xff]
        %v282 = vld [vmem:[%s216 + $0x138] sm:$0xff]
        %v283 = vld [vmem:[%s216 + $0x140] sm:$0xff]
        %v284 = vld [vmem:[%s216 + $0x148] sm:$0xff]
        %v285 = vld [vmem:[%s216 + $0x150] sm:$0xff]
        %v286 = vld [vmem:[%s216 + $0x158] sm:$0xff]
        %v287 = vld [vmem:[%s216 + $0x160] sm:$0xff]
        %v288 = vld [vmem:[%s216 + $0x168] sm:$0xff]
        %v289 = vld [vmem:[%s216 + $0x170] sm:$0xff]
        %v290 = vld [vmem:[%s216 + $0x178] sm:$0xff]
        %v291 = vld [vmem:[%s216 + $0x180] sm:$0xff]
        %v292 = vld [vmem:[%s216 + $0x188] sm:$0xff]
        %v293 = vld [vmem:[%s216 + $0x190] sm:$0xff]
        %v294 = vld [vmem:[%s216 + $0x198] sm:$0xff]
        %v295 = vld [vmem:[%s216 + $0x1a0] sm:$0xff]
        %v296 = vld [vmem:[%s216 + $0x1a8] sm:$0xff]
        %v297 = vld [vmem:[%s216 + $0x1b0] sm:$0xff]
        %v298 = vld [vmem:[%s216 + $0x1b8] sm:$0xff]
        %v299 = vld [vmem:[%s216 + $0x1c0] sm:$0xff]
        %v300 = vld [vmem:[%s216 + $0x1c8] sm:$0xff]
        %v301 = vld [vmem:[%s216 + $0x1d0] sm:$0xff]
        %v302 = vld [vmem:[%s216 + $0x1d8] sm:$0xff]
        %v303 = vld [vmem:[%s216 + $0x1e0] sm:$0xff]
        %v304 = vld [vmem:[%s216 + $0x1e8] sm:$0xff]
        %v305 = vld [vmem:[%s216 + $0x1f0] sm:$0xff]
        %v306 = vld [vmem:[%s216 + $0x1f8] sm:$0xff]
        %v307 = vadd.f32 %v243, %v244
        %v308 = vadd.f32 %v307, %v245
        %v309 = vadd.f32 %v308, %v246
        %v310 = vadd.f32 %v309, %v247
        %v311 = vadd.f32 %v310, %v248
        %v312 = vadd.f32 %v311, %v249
        %v313 = vadd.f32 %v312, %v250
        %314 = vadd.xlane.f32.xlu0 %v313
        %v315 = vpop.xlane.xlu0 %314
        %v316 = vadd.f32 %v251, %v252
        %v317 = vadd.f32 %v316, %v253
        %v318 = vadd.f32 %v317, %v254
        %v319 = vadd.f32 %v318, %v255
        %v320 = vadd.f32 %v319, %v256
        %v321 = vadd.f32 %v320, %v257
        %v322 = vadd.f32 %v321, %v258
        %323 = vadd.xlane.f32.xlu0 %v322
        %v324 = vpop.xlane.xlu0 %323
        %v325 = vadd.f32 %v259, %v260
        %v326 = vadd.f32 %v325, %v261
        %v327 = vadd.f32 %v326, %v262
        %v328 = vadd.f32 %v327, %v263
        %v329 = vadd.f32 %v328, %v264
        %v330 = vadd.f32 %v329, %v265
        %v331 = vadd.f32 %v330, %v266
        %332 = vadd.xlane.f32.xlu0 %v331
        %v333 = vpop.xlane.xlu0 %332
        %v334 = vadd.f32 %v267, %v268
        %v335 = vadd.f32 %v334, %v269
        %v336 = vadd.f32 %v335, %v270
        %v337 = vadd.f32 %v336, %v271
        %v338 = vadd.f32 %v337, %v272
        %v339 = vadd.f32 %v338, %v273
        %v340 = vadd.f32 %v339, %v274
        %341 = vadd.xlane.f32.xlu0 %v340
        %v342 = vpop.xlane.xlu0 %341
        %v343 = vadd.f32 %v275, %v276
        %v344 = vadd.f32 %v343, %v277
        %v345 = vadd.f32 %v344, %v278
        %v346 = vadd.f32 %v345, %v279
        %v347 = vadd.f32 %v346, %v280
        %v348 = vadd.f32 %v347, %v281
        %v349 = vadd.f32 %v348, %v282
        %350 = vadd.xlane.f32.xlu0 %v349
        %v351 = vpop.xlane.xlu0 %350
        %v352 = vadd.f32 %v283, %v284
        %v353 = vadd.f32 %v352, %v285
        %v354 = vadd.f32 %v353, %v286
        %v355 = vadd.f32 %v354, %v287
        %v356 = vadd.f32 %v355, %v288
        %v357 = vadd.f32 %v356, %v289
        %v358 = vadd.f32 %v357, %v290
        %359 = vadd.xlane.f32.xlu0 %v358
        %v360 = vpop.xlane.xlu0 %359
        %v361 = vadd.f32 %v291, %v292
        %v362 = vadd.f32 %v361, %v293
        %v363 = vadd.f32 %v362, %v294
        %v364 = vadd.f32 %v363, %v295
        %v365 = vadd.f32 %v364, %v296
        %v366 = vadd.f32 %v365, %v297
        %v367 = vadd.f32 %v366, %v298
        %368 = vadd.xlane.f32.xlu0 %v367
        %v369 = vpop.xlane.xlu0 %368
        %v370 = vadd.f32 %v299, %v300
        %v371 = vadd.f32 %v370, %v301
        %v372 = vadd.f32 %v371, %v302
        %v373 = vadd.f32 %v372, %v303
        %v374 = vadd.f32 %v373, %v304
        %v375 = vadd.f32 %v374, %v305
        %v376 = vadd.f32 %v375, %v306
        %377 = vadd.xlane.f32.xlu0 %v376
        %v378 = vpop.xlane.xlu0 %377
        %v379 = vmul.f32 %v315, 0.0009765625
        %v380 = vmul.f32 %v324, 0.0009765625
        %v381 = vmul.f32 %v333, 0.0009765625
        %v382 = vmul.f32 %v342, 0.0009765625
        %v383 = vmul.f32 %v351, 0.0009765625
        %v384 = vmul.f32 %v360, 0.0009765625
        %v385 = vmul.f32 %v369, 0.0009765625
        %v386 = vmul.f32 %v378, 0.0009765625
        %v387 = vld [vmem:[%s1] sm:$0xf]
        %v388 = vld [vmem:[%s2] sm:$0xf]
        %vm389 = vcmask 523264
        %v391 = vsel %vm389, %v387, 0
        %393 = vmatprep.subr.mxu0 0.0
        %394 = vmatpush1.msra.mxu0 %v379
        %395 = vmatprep.subr.mxu0 0.0
        %396 = vmatpush1.msra.mxu0 %v380
        %397 = vmatprep.subr.mxu0 0.0
        %398 = vmatpush1.msra.mxu0 %v381
        %399 = vmatprep.subr.mxu0 0.0
        %400 = vmatpush1.msra.mxu0 %v382
        %401 = vmatprep.subr.mxu0 0.0
        %402 = vmatpush1.msra.mxu0 %v383
        %403 = vmatprep.subr.mxu0 0.0
        %404 = vmatpush1.msra.mxu0 %v384
        %405 = vmatprep.subr.mxu0 0.0
        %406 = vmatpush1.msra.mxu0 %v385
        %407 = vmatprep.subr.mxu0 0.0
        %408 = vmatpush1.msra.mxu0 %v386
        %409 = vmatprep.subr.mxu0 0.0
        %410 = vmatpush1.msra.mxu0 0.0
        %411 = vmatprep.subr.mxu0 0.0
        %412 = vmatpush1.msra.mxu0 0.0
        %413 = vmatprep.subr.mxu0 0.0
        %414 = vmatpush1.msra.mxu0 0.0
        %415 = vmatprep.subr.mxu0 0.0
        %416 = vmatpush1.msra.mxu0 0.0
        %417 = vmatprep.subr.mxu0 0.0
        %418 = vmatpush1.msra.mxu0 0.0
        %419 = vmatprep.subr.mxu0 0.0
        %420 = vmatpush1.msra.mxu0 0.0
        %421 = vmatprep.subr.mxu0 0.0
        %422 = vmatpush1.msra.mxu0 0.0
        %423 = vmatprep.subr.mxu0 0.0
        %424 = vmatpush1.msra.mxu0 0.0
        %425 = vmatprep.subr.mxu0 0.0
        %426 = vmatpush1.msra.mxu0 0.0
        %427 = vmatprep.subr.mxu0 0.0
        %428 = vmatpush1.msra.mxu0 0.0
        %429 = vmatprep.subr.mxu0 0.0
        %430 = vmatpush1.msra.mxu0 0.0
        %431 = vmatprep.subr.mxu0 0.0
        %432 = vmatpush1.msra.mxu0 0.0
        %433 = vmatprep.subr.mxu0 0.0
        %434 = vmatpush1.msra.mxu0 0.0
        %435 = vmatprep.subr.mxu0 0.0
        %436 = vmatpush1.msra.mxu0 0.0
        %437 = vmatprep.subr.mxu0 0.0
        %438 = vmatpush1.msra.mxu0 0.0
        %439 = vmatprep.subr.mxu0 0.0
        %440 = vmatpush1.msra.mxu0 0.0
        %441 = vmatprep.subr.mxu0 0.0
        %442 = vmatpush1.msra.mxu0 0.0
        %443 = vmatprep.subr.mxu0 0.0
        %444 = vmatpush1.msra.mxu0 0.0
        %445 = vmatprep.subr.mxu0 0.0
        %446 = vmatpush1.msra.mxu0 0.0
        %447 = vmatprep.subr.mxu0 0.0
        %448 = vmatpush1.msra.mxu0 0.0
        %449 = vmatprep.subr.mxu0 0.0
        %450 = vmatpush1.msra.mxu0 0.0
        %451 = vmatprep.subr.mxu0 0.0
        %452 = vmatpush1.msra.mxu0 0.0
        %453 = vmatprep.subr.mxu0 0.0
        %454 = vmatpush1.msra.mxu0 0.0
        %455 = vmatprep.subr.mxu0 0.0
        %456 = vmatpush1.msra.mxu0 0.0
        %457 = vmatprep.mubr.f32.mxu0 0.0
        %458 = vmatmul.mubr.f32.gmra.mrb[0].mxu0 %v391
        %v459 = vpop.f32.mrb[0].mxu0
        %v460 = vadd.f32 %v388, %v459
        %v461 = vpop.f32.mrb[0].mxu0
        %462 = vdwg.mxu0
        %v463 = vmax.f32 %v460, 0.0
        %v464 = vld [vmem:[%s3] sm:$0xff]
        %v465 = vld [vmem:[%s3 + $0x8] sm:$0xff]
        %v466 = vld [vmem:[%s3 + $0x10] sm:$0xff]
        %v467 = vld [vmem:[%s3 + $0x18] sm:$0xff]
        %v468 = vld [vmem:[%s3 + $0x20] sm:$0xff]
        %v469 = vld [vmem:[%s3 + $0x28] sm:$0xff]
        %v470 = vld [vmem:[%s3 + $0x30] sm:$0xff]
        %v471 = vld [vmem:[%s3 + $0x38] sm:$0xff]
        %v472 = vld [vmem:[%s4] sm:$0xff]
        %v473 = vld [vmem:[%s4 + $0x8] sm:$0xff]
        %v474 = vld [vmem:[%s4 + $0x10] sm:$0xff]
        %v475 = vld [vmem:[%s4 + $0x18] sm:$0xff]
        %v476 = vld [vmem:[%s4 + $0x20] sm:$0xff]
        %v477 = vld [vmem:[%s4 + $0x28] sm:$0xff]
        %v478 = vld [vmem:[%s4 + $0x30] sm:$0xff]
        %v479 = vld [vmem:[%s4 + $0x38] sm:$0xff]
        %vm480 = vcmask 31744
        %v482 = vsel %vm480, %v464, 0
        %v485 = vsel %vm480, %v465, 0
        %v488 = vsel %vm480, %v466, 0
        %v491 = vsel %vm480, %v467, 0
        %v494 = vsel %vm480, %v468, 0
        %v497 = vsel %vm480, %v469, 0
        %v500 = vsel %vm480, %v470, 0
        %v503 = vsel %vm480, %v471, 0
        %vm505 = vcmask 1043456
        %v507 = vsel %vm505, %v463, 0
        %509 = vmatprep.subr.mxu0 0.0
        %510 = vmatpush1.msra.mxu0 %v507
        %511 = vmatprep.subr.mxu0 0.0
        %512 = vmatpush1.msra.mxu0 0.0
        %513 = vmatprep.subr.mxu0 0.0
        %514 = vmatpush1.msra.mxu0 0.0
        %515 = vmatprep.subr.mxu0 0.0
        %516 = vmatpush1.msra.mxu0 0.0
        %517 = vmatprep.subr.mxu0 0.0
        %518 = vmatpush1.msra.mxu0 0.0
        %519 = vmatprep.subr.mxu0 0.0
        %520 = vmatpush1.msra.mxu0 0.0
        %521 = vmatprep.subr.mxu0 0.0
        %522 = vmatpush1.msra.mxu0 0.0
        %523 = vmatprep.subr.mxu0 0.0
        %524 = vmatpush1.msra.mxu0 0.0
        %525 = vmatprep.subr.mxu0 0.0
        %526 = vmatpush1.msra.mxu0 0.0
        %527 = vmatprep.subr.mxu0 0.0
        %528 = vmatpush1.msra.mxu0 0.0
        %529 = vmatprep.subr.mxu0 0.0
        %530 = vmatpush1.msra.mxu0 0.0
        %531 = vmatprep.subr.mxu0 0.0
        %532 = vmatpush1.msra.mxu0 0.0
        %533 = vmatprep.subr.mxu0 0.0
        %534 = vmatpush1.msra.mxu0 0.0
        %535 = vmatprep.subr.mxu0 0.0
        %536 = vmatpush1.msra.mxu0 0.0
        %537 = vmatprep.subr.mxu0 0.0
        %538 = vmatpush1.msra.mxu0 0.0
        %539 = vmatprep.subr.mxu0 0.0
        %540 = vmatpush1.msra.mxu0 0.0
        %541 = vmatprep.subr.mxu0 0.0
        %542 = vmatpush1.msra.mxu0 0.0
        %543 = vmatprep.subr.mxu0 0.0
        %544 = vmatpush1.msra.mxu0 0.0
        %545 = vmatprep.subr.mxu0 0.0
        %546 = vmatpush1.msra.mxu0 0.0
        %547 = vmatprep.subr.mxu0 0.0
        %548 = vmatpush1.msra.mxu0 0.0
        %549 = vmatprep.subr.mxu0 0.0
        %550 = vmatpush1.msra.mxu0 0.0
        %551 = vmatprep.subr.mxu0 0.0
        %552 = vmatpush1.msra.mxu0 0.0
        %553 = vmatprep.subr.mxu0 0.0
        %554 = vmatpush1.msra.mxu0 0.0
        %555 = vmatprep.subr.mxu0 0.0
        %556 = vmatpush1.msra.mxu0 0.0
        %557 = vmatprep.subr.mxu0 0.0
        %558 = vmatpush1.msra.mxu0 0.0
        %559 = vmatprep.subr.mxu0 0.0
        %560 = vmatpush1.msra.mxu0 0.0
        %561 = vmatprep.subr.mxu0 0.0
        %562 = vmatpush1.msra.mxu0 0.0
        %563 = vmatprep.subr.mxu0 0.0
        %564 = vmatpush1.msra.mxu0 0.0
        %565 = vmatprep.subr.mxu0 0.0
        %566 = vmatpush1.msra.mxu0 0.0
        %567 = vmatprep.subr.mxu0 0.0
        %568 = vmatpush1.msra.mxu0 0.0
        %569 = vmatprep.subr.mxu0 0.0
        %570 = vmatpush1.msra.mxu0 0.0
        %571 = vmatprep.subr.mxu0 0.0
        %572 = vmatpush1.msra.mxu0 0.0
        %573 = vmatprep.mubr.f32.mxu0 0.0
        %574 = vmatmul.mubr.f32.gmra.mrb[0].mxu0 %v482
        %v575 = vpop.f32.mrb[0].mxu0
        %v576 = vadd.f32 %v472, %v575
        %v577 = vpop.f32.mrb[0].mxu0
        %578 = vmatprep.mubr.f32.mxu0 0.0
        %579 = vmatmul.mubr.f32.gmra.mrb[0].mxu0 %v485
        %v580 = vpop.f32.mrb[0].mxu0
        %v581 = vadd.f32 %v473, %v580
        %v582 = vpop.f32.mrb[0].mxu0
        %583 = vmatprep.mubr.f32.mxu0 0.0
        %584 = vmatmul.mubr.f32.gmra.mrb[0].mxu0 %v488
        %v585 = vpop.f32.mrb[0].mxu0
        %v586 = vadd.f32 %v474, %v585
        %v587 = vpop.f32.mrb[0].mxu0
        %588 = vmatprep.mubr.f32.mxu0 0.0
        %589 = vmatmul.mubr.f32.gmra.mrb[0].mxu0 %v491
        %v590 = vpop.f32.mrb[0].mxu0
        %v591 = vadd.f32 %v475, %v590
        %v592 = vpop.f32.mrb[0].mxu0
        %593 = vmatprep.mubr.f32.mxu0 0.0
        %594 = vmatmul.mubr.f32.gmra.mrb[0].mxu0 %v494
        %v595 = vpop.f32.mrb[0].mxu0
        %v596 = vadd.f32 %v476, %v595
        %v597 = vpop.f32.mrb[0].mxu0
        %598 = vmatprep.mubr.f32.mxu0 0.0
        %599 = vmatmul.mubr.f32.gmra.mrb[0].mxu0 %v497
        %v600 = vpop.f32.mrb[0].mxu0
        %v601 = vadd.f32 %v477, %v600
        %v602 = vpop.f32.mrb[0].mxu0
        %603 = vmatprep.mubr.f32.mxu0 0.0
        %604 = vmatmul.mubr.f32.gmra.mrb[0].mxu0 %v500
        %v605 = vpop.f32.mrb[0].mxu0
        %v606 = vadd.f32 %v478, %v605
        %v607 = vpop.f32.mrb[0].mxu0
        %608 = vmatprep.mubr.f32.mxu0 0.0
        %609 = vmatmul.mubr.f32.gmra.mrb[0].mxu0 %v503
        %v610 = vpop.f32.mrb[0].mxu0
        %v611 = vadd.f32 %v479, %v610
        %v612 = vpop.f32.mrb[0].mxu0
        %613 = vdwg.mxu0
        %v614 = vxor.u32 %v576, 2147483648
        %v615 = vxor.u32 %v581, 2147483648
        %v616 = vxor.u32 %v586, 2147483648
        %v617 = vxor.u32 %v591, 2147483648
        %v618 = vxor.u32 %v596, 2147483648
        %v619 = vxor.u32 %v601, 2147483648
        %v620 = vxor.u32 %v606, 2147483648
        %v621 = vxor.u32 %v611, 2147483648
        %v622 = vmul.f32 %v614, 1.442695
        %v623 = vpow.pop %v622
        %v624 = vmul.f32 %v615, 1.442695
        %v625 = vpow.pop %v624
        %v626 = vmul.f32 %v616, 1.442695
        %v627 = vpow.pop %v626
        %v628 = vmul.f32 %v617, 1.442695
        %v629 = vpow.pop %v628
        %v630 = vmul.f32 %v618, 1.442695
        %v631 = vpow.pop %v630
        %v632 = vmul.f32 %v619, 1.442695
        %v633 = vpow.pop %v632
        %v634 = vmul.f32 %v620, 1.442695
        %v635 = vpow.pop %v634
        %v636 = vmul.f32 %v621, 1.442695
        %v637 = vpow.pop %v636
        %v638 = vadd.f32 %v623, 1.0
        %v639 = vadd.f32 %v625, 1.0
        %v640 = vadd.f32 %v627, 1.0
        %v641 = vadd.f32 %v629, 1.0
        %v642 = vadd.f32 %v631, 1.0
        %v643 = vadd.f32 %v633, 1.0
        %v644 = vadd.f32 %v635, 1.0
        %v645 = vadd.f32 %v637, 1.0
        %v646 = vrcp.pop %v638
        %v647 = vmul.f32 1.0, %v646
        %v648 = vrcp.pop %v639
        %v649 = vmul.f32 1.0, %v648
        %v650 = vrcp.pop %v640
        %v651 = vmul.f32 1.0, %v650
        %v652 = vrcp.pop %v641
        %v653 = vmul.f32 1.0, %v652
        %v654 = vrcp.pop %v642
        %v655 = vmul.f32 1.0, %v654
        %v656 = vrcp.pop %v643
        %v657 = vmul.f32 1.0, %v656
        %v658 = vrcp.pop %v644
        %v659 = vmul.f32 1.0, %v658
        %v660 = vrcp.pop %v645
        %v661 = vmul.f32 1.0, %v660
        %663 = vset.pattern.permute.xlu0 0
        %664 = vperm.xlu0 %663, %v647
        %v665 = vpop.permute.xlu0 %664
        %668 = vset.pattern.permute.xlu0 0
        %669 = vperm.xlu0 %668, %v649
        %v670 = vpop.permute.xlu0 %669
        %673 = vset.pattern.permute.xlu0 0
        %674 = vperm.xlu0 %673, %v651
        %v675 = vpop.permute.xlu0 %674
        %678 = vset.pattern.permute.xlu0 0
        %679 = vperm.xlu0 %678, %v653
        %v680 = vpop.permute.xlu0 %679
        %683 = vset.pattern.permute.xlu0 0
        %684 = vperm.xlu0 %683, %v655
        %v685 = vpop.permute.xlu0 %684
        %688 = vset.pattern.permute.xlu0 0
        %689 = vperm.xlu0 %688, %v657
        %v690 = vpop.permute.xlu0 %689
        %693 = vset.pattern.permute.xlu0 0
        %694 = vperm.xlu0 %693, %v659
        %v695 = vpop.permute.xlu0 %694
        %698 = vset.pattern.permute.xlu0 0
        %699 = vperm.xlu0 %698, %v661
        %v700 = vpop.permute.xlu0 %699
        %v702 = vmul.f32 %v243, %v665
        %v703 = vmul.f32 %v244, %v665
        %v704 = vmul.f32 %v245, %v665
        %v705 = vmul.f32 %v246, %v665
        %v706 = vmul.f32 %v247, %v665
        %v707 = vmul.f32 %v248, %v665
        %v708 = vmul.f32 %v249, %v665
        %v709 = vmul.f32 %v250, %v665
        %v710 = vmul.f32 %v251, %v670
        %v711 = vmul.f32 %v252, %v670
        %v712 = vmul.f32 %v253, %v670
        %v713 = vmul.f32 %v254, %v670
        %v714 = vmul.f32 %v255, %v670
        %v715 = vmul.f32 %v256, %v670
        %v716 = vmul.f32 %v257, %v670
        %v717 = vmul.f32 %v258, %v670
        %v718 = vmul.f32 %v259, %v675
        %v719 = vmul.f32 %v260, %v675
        %v720 = vmul.f32 %v261, %v675
        %v721 = vmul.f32 %v262, %v675
        %v722 = vmul.f32 %v263, %v675
        %v723 = vmul.f32 %v264, %v675
        %v724 = vmul.f32 %v265, %v675
        %v725 = vmul.f32 %v266, %v675
        %v726 = vmul.f32 %v267, %v680
        %v727 = vmul.f32 %v268, %v680
        %v728 = vmul.f32 %v269, %v680
        %v729 = vmul.f32 %v270, %v680
        %v730 = vmul.f32 %v271, %v680
        %v731 = vmul.f32 %v272, %v680
        %v732 = vmul.f32 %v273, %v680
        %v733 = vmul.f32 %v274, %v680
        %v734 = vmul.f32 %v275, %v685
        %v735 = vmul.f32 %v276, %v685
        %v736 = vmul.f32 %v277, %v685
        %v737 = vmul.f32 %v278, %v685
        %v738 = vmul.f32 %v279, %v685
        %v739 = vmul.f32 %v280, %v685
        %v740 = vmul.f32 %v281, %v685
        %v741 = vmul.f32 %v282, %v685
        %v742 = vmul.f32 %v283, %v690
        %v743 = vmul.f32 %v284, %v690
        %v744 = vmul.f32 %v285, %v690
        %v745 = vmul.f32 %v286, %v690
        %v746 = vmul.f32 %v287, %v690
        %v747 = vmul.f32 %v288, %v690
        %v748 = vmul.f32 %v289, %v690
        %v749 = vmul.f32 %v290, %v690
        %v750 = vmul.f32 %v291, %v695
        %v751 = vmul.f32 %v292, %v695
        %v752 = vmul.f32 %v293, %v695
        %v753 = vmul.f32 %v294, %v695
        %v754 = vmul.f32 %v295, %v695
        %v755 = vmul.f32 %v296, %v695
        %v756 = vmul.f32 %v297, %v695
        %v757 = vmul.f32 %v298, %v695
        %v758 = vmul.f32 %v299, %v700
        %v759 = vmul.f32 %v300, %v700
        %v760 = vmul.f32 %v301, %v700
        %v761 = vmul.f32 %v302, %v700
        %v762 = vmul.f32 %v303, %v700
        %v763 = vmul.f32 %v304, %v700
        %v764 = vmul.f32 %v305, %v700
        %v765 = vmul.f32 %v306, %v700
        %766 = vst [vmem:[%s242] sm:$0xff] %v702
        %767 = vst [vmem:[%s242 + $0x8] sm:$0xff] %v703
        %768 = vst [vmem:[%s242 + $0x10] sm:$0xff] %v704
        %769 = vst [vmem:[%s242 + $0x18] sm:$0xff] %v705
        %770 = vst [vmem:[%s242 + $0x20] sm:$0xff] %v706
        %771 = vst [vmem:[%s242 + $0x28] sm:$0xff] %v707
        %772 = vst [vmem:[%s242 + $0x30] sm:$0xff] %v708
        %773 = vst [vmem:[%s242 + $0x38] sm:$0xff] %v709
        %774 = vst [vmem:[%s242 + $0x40] sm:$0xff] %v710
        %775 = vst [vmem:[%s242 + $0x48] sm:$0xff] %v711
        %776 = vst [vmem:[%s242 + $0x50] sm:$0xff] %v712
        %777 = vst [vmem:[%s242 + $0x58] sm:$0xff] %v713
        %778 = vst [vmem:[%s242 + $0x60] sm:$0xff] %v714
        %779 = vst [vmem:[%s242 + $0x68] sm:$0xff] %v715
        %780 = vst [vmem:[%s242 + $0x70] sm:$0xff] %v716
        %781 = vst [vmem:[%s242 + $0x78] sm:$0xff] %v717
        %782 = vst [vmem:[%s242 + $0x80] sm:$0xff] %v718
        %783 = vst [vmem:[%s242 + $0x88] sm:$0xff] %v719
        %784 = vst [vmem:[%s242 + $0x90] sm:$0xff] %v720
        %785 = vst [vmem:[%s242 + $0x98] sm:$0xff] %v721
        %786 = vst [vmem:[%s242 + $0xa0] sm:$0xff] %v722
        %787 = vst [vmem:[%s242 + $0xa8] sm:$0xff] %v723
        %788 = vst [vmem:[%s242 + $0xb0] sm:$0xff] %v724
        %789 = vst [vmem:[%s242 + $0xb8] sm:$0xff] %v725
        %790 = vst [vmem:[%s242 + $0xc0] sm:$0xff] %v726
        %791 = vst [vmem:[%s242 + $0xc8] sm:$0xff] %v727
        %792 = vst [vmem:[%s242 + $0xd0] sm:$0xff] %v728
        %793 = vst [vmem:[%s242 + $0xd8] sm:$0xff] %v729
        %794 = vst [vmem:[%s242 + $0xe0] sm:$0xff] %v730
        %795 = vst [vmem:[%s242 + $0xe8] sm:$0xff] %v731
        %796 = vst [vmem:[%s242 + $0xf0] sm:$0xff] %v732
        %797 = vst [vmem:[%s242 + $0xf8] sm:$0xff] %v733
        %798 = vst [vmem:[%s242 + $0x100] sm:$0xff] %v734
        %799 = vst [vmem:[%s242 + $0x108] sm:$0xff] %v735
        %800 = vst [vmem:[%s242 + $0x110] sm:$0xff] %v736
        %801 = vst [vmem:[%s242 + $0x118] sm:$0xff] %v737
        %802 = vst [vmem:[%s242 + $0x120] sm:$0xff] %v738
        %803 = vst [vmem:[%s242 + $0x128] sm:$0xff] %v739
        %804 = vst [vmem:[%s242 + $0x130] sm:$0xff] %v740
        %805 = vst [vmem:[%s242 + $0x138] sm:$0xff] %v741
        %806 = vst [vmem:[%s242 + $0x140] sm:$0xff] %v742
        %807 = vst [vmem:[%s242 + $0x148] sm:$0xff] %v743
        %808 = vst [vmem:[%s242 + $0x150] sm:$0xff] %v744
        %809 = vst [vmem:[%s242 + $0x158] sm:$0xff] %v745
        %810 = vst [vmem:[%s242 + $0x160] sm:$0xff] %v746
        %811 = vst [vmem:[%s242 + $0x168] sm:$0xff] %v747
        %812 = vst [vmem:[%s242 + $0x170] sm:$0xff] %v748
        %813 = vst [vmem:[%s242 + $0x178] sm:$0xff] %v749
        %814 = vst [vmem:[%s242 + $0x180] sm:$0xff] %v750
        %815 = vst [vmem:[%s242 + $0x188] sm:$0xff] %v751
        %816 = vst [vmem:[%s242 + $0x190] sm:$0xff] %v752
        %817 = vst [vmem:[%s242 + $0x198] sm:$0xff] %v753
        %818 = vst [vmem:[%s242 + $0x1a0] sm:$0xff] %v754
        %819 = vst [vmem:[%s242 + $0x1a8] sm:$0xff] %v755
        %820 = vst [vmem:[%s242 + $0x1b0] sm:$0xff] %v756
        %821 = vst [vmem:[%s242 + $0x1b8] sm:$0xff] %v757
        %822 = vst [vmem:[%s242 + $0x1c0] sm:$0xff] %v758
        %823 = vst [vmem:[%s242 + $0x1c8] sm:$0xff] %v759
        %824 = vst [vmem:[%s242 + $0x1d0] sm:$0xff] %v760
        %825 = vst [vmem:[%s242 + $0x1d8] sm:$0xff] %v761
        %826 = vst [vmem:[%s242 + $0x1e0] sm:$0xff] %v762
        %827 = vst [vmem:[%s242 + $0x1e8] sm:$0xff] %v763
        %828 = vst [vmem:[%s242 + $0x1f0] sm:$0xff] %v764
        %829 = vst [vmem:[%s242 + $0x1f8] sm:$0xff] %v765
        %s830 = sand.u32 %s140, 1
        %s831 = scalar_lea.sflag [#allocation4], %s830
        %s832 = sand.u32 %s140, 1
        %s833 = smul.addr %s832, 512
        %s834 = scalar_lea.vmem [#allocation5], %s833
        // Predicated region
        $region45: #{tpu_custom_call.1} parent=39 // pred_check
          %p835 = pneg %p150
        $region46: #{tpu_custom_call.1} parent=39 // pred_check_branch
          %837 = sbr.rel (%p835) target = $region48
        $region47: #{tpu_custom_call.1} parent=39 // pred_region
          %s839 = ssub.s32 8192, 8192
          %840 = vsyncadd %s831, %s839
          %s841 = smul.addr %s22, 64
          %s842 = smul.addr %s841, 128
          %s843 = scalar_lea.hbm %s5, %s842
          %s844 = sshll.u32 %s834, 4
          %s845 = int_to_ptr.vmem [resolvable:$true] %s844
          %850 = dma.vmem_to_hbm [thread:$0]  %s845, 8192, %s843, %s831, 1024, 1024, 64
        $region48: #{tpu_custom_call.1} parent=39 // pred_fallthru
          _
      $region40: #{tpu_custom_call.1} parent=5 // pred_fallthru
        _
      %p851 = scmp.le.s32.totalorder 2, %s17
      // Predicated region
      $region49: #{tpu_custom_call.1} parent=5 // pred_check
        %p852 = pneg %p851
      $region50: #{tpu_custom_call.1} parent=5 // pred_check_branch
        %854 = sbr.rel (%p852) target = $region52
      $region51: #{tpu_custom_call.1} parent=5 // pred_region
        %s855 = ssub.s32 %s17, 2
        // Predicated region
        $region53: #{tpu_custom_call.1} parent=51 // pred_check
          %p856 = pneg %p156
        $region54: #{tpu_custom_call.1} parent=51 // pred_check_branch
          %858 = sbr.rel (%p856) target = $region56
        $region55: #{tpu_custom_call.1} parent=51 // pred_region
          %s859 = sand.u32 %s141, 1
          %s860 = scalar_lea.sflag [#allocation4], %s859
          %s861 = sand.u32 %s141, 1
          %s862 = smul.addr %s861, 512
          %s863 = scalar_lea.vmem [#allocation5], %s862
          %864 = dma.done %s860, 8192
        $region56: #{tpu_custom_call.1} parent=51 // pred_fallthru
          _
      $region52: #{tpu_custom_call.1} parent=5 // pred_fallthru
        _
    $region6: #{tpu_custom_call.1} parent=1 // loop_footer
      %s21 = sadd.s32 1, %s17
    $region7: #{tpu_custom_call.1} parent=1 // loop_footer_branch
      %16 = sbr.rel target = $region3
    $region8: #{tpu_custom_call.1} parent=1 // loop_exit
      _
    %865 = vsyncpa [#allocation3], 1
    %s866 = scalar_lea.sflag [#allocation3], 1
    %867 = vsyncpa %s866, 1
    %868 = vsyncpa [#allocation4], 1
    %s869 = scalar_lea.sflag [#allocation4], 1
    %870 = vsyncpa %s869, 1

</llo_original>
